<compile_context>
chip_gen: v7x
topology: tpu7x:2x2x1
jax: 0.10.0
libtpu: 0.0.40
codegen_flags: <defaults>
</compile_context>

<pallas_src>
import jax
import jax.numpy as jnp
from jax import lax
from jax.experimental import pallas as pl
from jax.experimental.pallas import tpu as pltpu

HIDDEN = 128
REP_DIM = HIDDEN + 10          # last dim of `representation` (138)
IN_DIM = REP_DIM + 1           # fc1 fan-in = hidden + 1 + 10 = 139
LANE = 128                     # lane width; row tile is kept a multiple of this
MAX_TILE_N = 2048              # rows per grid step (VMEM stays well under limits)


def _round_up(x, m):
    return ((x + m - 1) // m) * m


def _choose_tile(n):
    # Multiple of 128 (lane-dense (2, tile) output block); cap at MAX_TILE_N;
    # for large n make sure there are >=2 grid steps so v7x's two TensorCores
    # both get work (harmless on single-TC v5e/v6e).
    tile = _round_up(pl.cdiv(n, 2), LANE)
    return max(LANE, min(MAX_TILE_N, tile))


def decoder_kernel(
    rep_ref, tx_ref,
    w1r_ref, w1x_ref, b1_ref,
    w2_ref, b2_ref,
    w3_ref, b3_ref,
    out_ref,
):
    f32 = jnp.float32
    bf16 = jnp.bfloat16

    rep = rep_ref[...].astype(bf16)          # (T, REP_DIM) -> bf16 for the MXU
    tx = tx_ref[...]                         # (T, 1) f32

    # fc1: bf16 MXU matmul (f32 accumulate) + rank-1 update for the target_x
    # column of the original concat (never materialized) + bias, then ReLU.
    h = (jnp.dot(rep, w1r_ref[...], preferred_element_type=f32)
         + tx * w1x_ref[...]
         + b1_ref[...])
    h = jnp.maximum(h, 0.0)

    # fc2 + ReLU (bf16 MXU, f32 accumulate).
    h = jnp.maximum(
        jnp.dot(h.astype(bf16), w2_ref[...], preferred_element_type=f32)
        + b2_ref[...], 0.0)

    # fc3 computed directly in transposed, lane-dense form:
    #   x3t[c, t] = sum_k w3t[c, k] * h[t, k]    (A @ B^T; tiny, so f32 is fine)
    x3t = lax.dot_general(
        w3_ref[...], h,
        dimension_numbers=(((1,), (1,)), ((), ())),
        preferred_element_type=f32) + b3_ref[...]              # (2, T)

    # Row 0 = mu, row 1 = 0.1 + 0.9 * softplus(log_sigma).
    # Stable softplus on the whole lane-dense (2, T) slab, then select per row.
    sp = jnp.maximum(x3t, 0.0) + jnp.log(1.0 + jnp.exp(-jnp.abs(x3t)))
    sigma_all = 0.1 + 0.9 * sp
    row = lax.broadcasted_iota(jnp.int32, x3t.shape, 0)
    out_ref[...] = jnp.where(row == 0, x3t, sigma_all)          # (2, T) dense store


def decoder(kparams, representation, target_x, shots=None):
    # `shots` is accepted for signature parity with the PyTorch module but is
    # unused in its forward pass.
    del shots
    assert representation.ndim == 3 and representation.shape[0] == 1
    n = representation.shape[1]
    assert representation.shape[2] == REP_DIM
    assert target_x.shape == (n, 1)

    tile = _choose_tile(n)
    grid = (pl.cdiv(n, tile),)               # ragged last block; no wrapper pad

    def rep_map(i):
        return (0, i, 0)

    def row_map(i):
        return (i, 0)

    def col_map(i):
        return (0, i)

    def const_map(i):
        return (0, 0)

    out = pl.pallas_call(
        decoder_kernel,
        grid=grid,
        in_specs=[
            # leading dim of `representation` squeezed away inside the kernel
            pl.BlockSpec((None, tile, REP_DIM), rep_map),
            pl.BlockSpec((tile, 1), row_map),              # target_x rows
            pl.BlockSpec((REP_DIM, HIDDEN), const_map),    # w1 (rep part), resident
            pl.BlockSpec((1, HIDDEN), const_map),          # w1 (target_x column)
            pl.BlockSpec((1, HIDDEN), const_map),          # b1
            pl.BlockSpec((HIDDEN, HIDDEN), const_map),     # w2
            pl.BlockSpec((1, HIDDEN), const_map),          # b2
            pl.BlockSpec((2, HIDDEN), const_map),          # w3 (transposed)
            pl.BlockSpec((2, 1), const_map),               # b3 (transposed)
        ],
        out_specs=pl.BlockSpec((2, tile), col_map),        # lane-dense output
        out_shape=jax.ShapeDtypeStruct((2, n), jnp.float32),
        compiler_params=pltpu.CompilerParams(
            dimension_semantics=("parallel",)),
    )(representation, target_x,
      kparams["w1r"], kparams["w1x"], kparams["b1"],
      kparams["w2"], kparams["b2"],
      kparams["w3t"], kparams["b3t"])

    # PyTorch returns mu, sigma each of shape (1, N)
    mu = out[0:1, :]
    sigma = out[1:2, :]
    return mu, sigma


# ---------------- deterministic parameter construction (glue) ----------------
def init_params(key):
    """f32 'master' parameters matching nn.Linear's default init (transposed)."""
    ks = jax.random.split(key, 6)

    def linear(kw, kb, fan_in, fan_out):
        bound = 1.0 / (fan_in ** 0.5)
        w_t = jax.random.uniform(kw, (fan_in, fan_out), jnp.float32, -bound, bound)
        b = jax.random.uniform(kb, (1, fan_out), jnp.float32, -bound, bound)
        return w_t, b

    p = {}
    p["w1t"], p["b1"] = linear(ks[0], ks[1], IN_DIM, HIDDEN)
    p["w2t"], p["b2"] = linear(ks[2], ks[3], HIDDEN, HIDDEN)
    p["w3t"], p["b3"] = linear(ks[4], ks[5], HIDDEN, 2)
    return p


def prepare_params(p):
    """One-time pre-pack for the kernel: split fc1 into the rep block and the
    target_x column, cast the big matmul weights to bf16, and transpose fc3 so
    the epilogue is lane-dense.  Done once, not on every decoder() call."""
    w1t = p["w1t"]
    return {
        "w1r": w1t[:REP_DIM, :].astype(jnp.bfloat16),       # (REP_DIM, HIDDEN)
        "w1x": w1t[REP_DIM:REP_DIM + 1, :],                 # (1, HIDDEN) f32
        "b1": p["b1"],                                      # (1, HIDDEN) f32
        "w2": p["w2t"].astype(jnp.bfloat16),                # (HIDDEN, HIDDEN)
        "b2": p["b2"],                                      # (1, HIDDEN) f32
        "w3t": p["w3t"].T,                                  # (2, HIDDEN) f32
        "b3t": p["b3"].T,                                   # (2, 1) f32
    }


# ---------------- pure-JAX reference (for correctness check) -----------------
def reference(params, representation, target_x):
    tx = target_x[None, :, :]                               # (1, N, 1)
    x = jnp.concatenate([representation, tx], axis=-1)      # (1, N, IN_DIM)
    h = jax.nn.relu(x @ params["w1t"] + params["b1"])
    h = jax.nn.relu(h @ params["w2t"] + params["b2"])
    x3 = h @ params["w3t"] + params["b3"]                   # (1, N, 2)
    mu = x3[:, :, 0]
    log_sigma = x3[:, :, 1]
    sigma = 0.1 + 0.9 * jax.nn.softplus(log_sigma)
    return mu, sigma


if __name__ == "__main__":
    N = 200   # small; exercises 2 grid steps and a ragged last block
    key = jax.random.PRNGKey(0)
    k_rep, k_tx = jax.random.split(key, 2)
    representation = jax.random.normal(k_rep, (1, N, REP_DIM), jnp.float32)
    target_x = jax.random.normal(k_tx, (N, 1), jnp.float32)
    shots = 5  # unused by the module's forward

    params = init_params(jax.random.PRNGKey(42))
    kparams = jax.block_until_ready(prepare_params(params))  # one-time pre-pack

    mu, sigma = decoder(kparams, representation, target_x, shots)
    mu = jax.block_until_ready(mu)
    sigma = jax.block_until_ready(sigma)

    mu_ref, sigma_ref = reference(params, representation, target_x)
    assert mu.shape == (1, N), mu.shape
    assert sigma.shape == (1, N), sigma.shape
    err = max(float(jnp.max(jnp.abs(mu - mu_ref))),
              float(jnp.max(jnp.abs(sigma - sigma_ref))))
    # bf16 matmuls with f32 accumulation vs. the f32 reference: loosened tolerance
    assert err < 2e-2, f"max abs err {err}"

    print("KERNEL_OK")
</pallas_src>

<mosaic_0001>
module attributes {stable_mosaic.version = 11 : i64} {
  func.func @decoder_kernel(%arg0: i32, %arg1: memref<1x128x138xf32, #tpu.memory_space<vmem>>, %arg2: memref<128x1xf32, #tpu.memory_space<vmem>>, %arg3: memref<138x128xbf16, #tpu.memory_space<vmem>>, %arg4: memref<1x128xf32, #tpu.memory_space<vmem>>, %arg5: memref<1x128xf32, #tpu.memory_space<vmem>>, %arg6: memref<128x128xbf16, #tpu.memory_space<vmem>>, %arg7: memref<1x128xf32, #tpu.memory_space<vmem>>, %arg8: memref<2x128xf32, #tpu.memory_space<vmem>>, %arg9: memref<2x1xf32, #tpu.memory_space<vmem>>, %arg10: memref<2x128xf32, #tpu.memory_space<vmem>>) attributes {dimension_semantics = [#tpu.dimension_semantics<parallel>], iteration_bounds = array<i64: 2>, scalar_prefetch = 0 : i64, scratch_operands = 0 : i64, tpu.core_type = #tpu.core_type<tc>, window_params = [{transform_indices = @transform_0, window_bounds = array<i64: 1, 128, 138>}, {transform_indices = @transform_1, window_bounds = array<i64: 128, 1>}, {pipeline_mode = #tpu.pipeline_mode<synchronous>, transform_indices = @transform_2, window_bounds = array<i64: 138, 128>}, {pipeline_mode = #tpu.pipeline_mode<synchronous>, transform_indices = @transform_3, window_bounds = array<i64: 1, 128>}, {pipeline_mode = #tpu.pipeline_mode<synchronous>, transform_indices = @transform_4, window_bounds = array<i64: 1, 128>}, {pipeline_mode = #tpu.pipeline_mode<synchronous>, transform_indices = @transform_5, window_bounds = array<i64: 128, 128>}, {pipeline_mode = #tpu.pipeline_mode<synchronous>, transform_indices = @transform_6, window_bounds = array<i64: 1, 128>}, {pipeline_mode = #tpu.pipeline_mode<synchronous>, transform_indices = @transform_7, window_bounds = array<i64: 2, 128>}, {pipeline_mode = #tpu.pipeline_mode<synchronous>, transform_indices = @transform_8, window_bounds = array<i64: 2, 1>}, {transform_indices = @transform_9, window_bounds = array<i64: 2, 128>}]} {
    %c0 = arith.constant 0 : index
    %c0_0 = arith.constant 0 : index
    %c0_1 = arith.constant 0 : index
    %0 = vector.load %arg1[%c0, %c0_0, %c0_1] : memref<1x128x138xf32, #tpu.memory_space<vmem>>, vector<1x128x138xf32>
    %1 = vector.shape_cast %0 : vector<1x128x138xf32> to vector<128x138xf32>
    %2 = arith.truncf %1 : vector<128x138xf32> to vector<128x138xbf16>
    %c0_2 = arith.constant 0 : index
    %c0_3 = arith.constant 0 : index
    %3 = vector.load %arg2[%c0_2, %c0_3] : memref<128x1xf32, #tpu.memory_space<vmem>>, vector<128x1xf32>
    %c0_4 = arith.constant 0 : index
    %c0_5 = arith.constant 0 : index
    %4 = vector.load %arg3[%c0_4, %c0_5] : memref<138x128xbf16, #tpu.memory_space<vmem>>, vector<138x128xbf16>
    %cst = arith.constant dense<0.000000e+00> : vector<128x128xf32>
    %5 = tpu.matmul %2, %4, %cst {dimension_numbers = #tpu.dot_dimension_numbers<[1], [0], [0], [1], [0, 0, 1, 1], [], []>} : vector<128x138xbf16>, vector<138x128xbf16>, vector<128x128xf32> -> vector<128x128xf32>
    %c0_6 = arith.constant 0 : index
    %c0_7 = arith.constant 0 : index
    %6 = vector.load %arg4[%c0_6, %c0_7] : memref<1x128xf32, #tpu.memory_space<vmem>>, vector<1x128xf32>
    %7 = vector.broadcast %3 : vector<128x1xf32> to vector<128x128xf32>
    %8 = vector.broadcast %6 : vector<1x128xf32> to vector<128x128xf32>
    %9 = arith.mulf %7, %8 : vector<128x128xf32>
    %10 = arith.addf %5, %9 : vector<128x128xf32>
    %c0_8 = arith.constant 0 : index
    %c0_9 = arith.constant 0 : index
    %11 = vector.load %arg5[%c0_8, %c0_9] : memref<1x128xf32, #tpu.memory_space<vmem>>, vector<1x128xf32>
    %12 = vector.broadcast %11 : vector<1x128xf32> to vector<128x128xf32>
    %13 = arith.addf %10, %12 : vector<128x128xf32>
    %cst_10 = arith.constant 0.000000e+00 : f32
    %14 = vector.broadcast %cst_10 : f32 to vector<128x128xf32>
    %15 = arith.maximumf %13, %14 : vector<128x128xf32>
    %16 = arith.truncf %15 : vector<128x128xf32> to vector<128x128xbf16>
    %c0_11 = arith.constant 0 : index
    %c0_12 = arith.constant 0 : index
    %17 = vector.load %arg6[%c0_11, %c0_12] : memref<128x128xbf16, #tpu.memory_space<vmem>>, vector<128x128xbf16>
    %cst_13 = arith.constant dense<0.000000e+00> : vector<128x128xf32>
    %18 = tpu.matmul %16, %17, %cst_13 {dimension_numbers = #tpu.dot_dimension_numbers<[1], [0], [0], [1], [0, 0, 1, 1], [], []>} : vector<128x128xbf16>, vector<128x128xbf16>, vector<128x128xf32> -> vector<128x128xf32>
    %c0_14 = arith.constant 0 : index
    %c0_15 = arith.constant 0 : index
    %19 = vector.load %arg7[%c0_14, %c0_15] : memref<1x128xf32, #tpu.memory_space<vmem>>, vector<1x128xf32>
    %20 = vector.broadcast %19 : vector<1x128xf32> to vector<128x128xf32>
    %21 = arith.addf %18, %20 : vector<128x128xf32>
    %cst_16 = arith.constant 0.000000e+00 : f32
    %22 = vector.broadcast %cst_16 : f32 to vector<128x128xf32>
    %23 = arith.maximumf %21, %22 : vector<128x128xf32>
    %c0_17 = arith.constant 0 : index
    %c0_18 = arith.constant 0 : index
    %24 = vector.load %arg8[%c0_17, %c0_18] : memref<2x128xf32, #tpu.memory_space<vmem>>, vector<2x128xf32>
    %cst_19 = arith.constant dense<0.000000e+00> : vector<2x128xf32>
    %25 = tpu.matmul %24, %23, %cst_19 {dimension_numbers = #tpu.dot_dimension_numbers<[1], [1], [0], [0], [0, 0, 1, 0], [], []>} : vector<2x128xf32>, vector<128x128xf32>, vector<2x128xf32> -> vector<2x128xf32>
    %c0_20 = arith.constant 0 : index
    %c0_21 = arith.constant 0 : index
    %26 = vector.load %arg9[%c0_20, %c0_21] : memref<2x1xf32, #tpu.memory_space<vmem>>, vector<2x1xf32>
    %27 = vector.broadcast %26 : vector<2x1xf32> to vector<2x128xf32>
    %28 = arith.addf %25, %27 : vector<2x128xf32>
    %cst_22 = arith.constant 0.000000e+00 : f32
    %29 = vector.broadcast %cst_22 : f32 to vector<2x128xf32>
    %30 = arith.maximumf %28, %29 : vector<2x128xf32>
    %31 = math.absf %28 : vector<2x128xf32>
    %cst_23 = arith.constant 0.000000e+00 : f32
    %32 = vector.broadcast %cst_23 : f32 to vector<2x128xf32>
    %33 = arith.subf %32, %31 : vector<2x128xf32>
    %34 = math.exp %33 : vector<2x128xf32>
    %cst_24 = arith.constant 1.000000e+00 : f32
    %35 = vector.broadcast %cst_24 : f32 to vector<2x128xf32>
    %36 = arith.addf %35, %34 : vector<2x128xf32>
    %37 = math.log %36 : vector<2x128xf32>
    %38 = arith.addf %30, %37 : vector<2x128xf32>
    %cst_25 = arith.constant 0.899999976 : f32
    %39 = vector.broadcast %cst_25 : f32 to vector<2x128xf32>
    %40 = arith.mulf %39, %38 : vector<2x128xf32>
    %cst_26 = arith.constant 1.000000e-01 : f32
    %41 = vector.broadcast %cst_26 : f32 to vector<2x128xf32>
    %42 = arith.addf %41, %40 : vector<2x128xf32>
    %43 = tpu.iota {dimensions = array<i32: 0>} : vector<2x128xi32>
    %c0_i32 = arith.constant 0 : i32
    %44 = vector.broadcast %c0_i32 : i32 to vector<2x128xi32>
    %45 = arith.cmpi eq, %43, %44 : vector<2x128xi32>
    %46 = arith.select %45, %28, %42 : vector<2x128xi1>, vector<2x128xf32>
    %c0_27 = arith.constant 0 : index
    %c0_28 = arith.constant 0 : index
    %47 = vector.load %arg10[%c0_27, %c0_28] : memref<2x128xf32, #tpu.memory_space<vmem>>, vector<2x128xf32>
    tpu.vector_store %arg10[%c0_27, %c0_28], %46 {strides = array<i32>} : memref<2x128xf32, #tpu.memory_space<vmem>>, vector<2x128xf32>,
    return
  }
  func.func @transform_0(%arg0: i32) -> (i32, i32, i32) {
    %c0_i32 = arith.constant 0 : i32
    %c0_i32_0 = arith.constant 0 : i32
    %c0_i32_1 = arith.constant 0 : i32
    return %c0_i32, %arg0, %c0_i32_0 : i32, i32, i32
  }
  func.func @transform_1(%arg0: i32) -> (i32, i32) {
    %c0_i32 = arith.constant 0 : i32
    %c0_i32_0 = arith.constant 0 : i32
    return %arg0, %c0_i32 : i32, i32
  }
  func.func @transform_2(%arg0: i32) -> (i32, i32) {
    %c0_i32 = arith.constant 0 : i32
    %c0_i32_0 = arith.constant 0 : i32
    %c0_i32_1 = arith.constant 0 : i32
    return %c0_i32, %c0_i32_0 : i32, i32
  }
  func.func @transform_3(%arg0: i32) -> (i32, i32) {
    %c0_i32 = arith.constant 0 : i32
    %c0_i32_0 = arith.constant 0 : i32
    %c0_i32_1 = arith.constant 0 : i32
    return %c0_i32, %c0_i32_0 : i32, i32
  }
  func.func @transform_4(%arg0: i32) -> (i32, i32) {
    %c0_i32 = arith.constant 0 : i32
    %c0_i32_0 = arith.constant 0 : i32
    %c0_i32_1 = arith.constant 0 : i32
    return %c0_i32, %c0_i32_0 : i32, i32
  }
  func.func @transform_5(%arg0: i32) -> (i32, i32) {
    %c0_i32 = arith.constant 0 : i32
    %c0_i32_0 = arith.constant 0 : i32
    %c0_i32_1 = arith.constant 0 : i32
    return %c0_i32, %c0_i32_0 : i32, i32
  }
  func.func @transform_6(%arg0: i32) -> (i32, i32) {
    %c0_i32 = arith.constant 0 : i32
    %c0_i32_0 = arith.constant 0 : i32
    %c0_i32_1 = arith.constant 0 : i32
    return %c0_i32, %c0_i32_0 : i32, i32
  }
  func.func @transform_7(%arg0: i32) -> (i32, i32) {
    %c0_i32 = arith.constant 0 : i32
    %c0_i32_0 = arith.constant 0 : i32
    %c0_i32_1 = arith.constant 0 : i32
    return %c0_i32, %c0_i32_0 : i32, i32
  }
  func.func @transform_8(%arg0: i32) -> (i32, i32) {
    %c0_i32 = arith.constant 0 : i32
    %c0_i32_0 = arith.constant 0 : i32
    %c0_i32_1 = arith.constant 0 : i32
    return %c0_i32, %c0_i32_0 : i32, i32
  }
  func.func @transform_9(%arg0: i32) -> (i32, i32) {
    %c0_i32 = arith.constant 0 : i32
    %c0_i32_0 = arith.constant 0 : i32
    return %c0_i32, %arg0 : i32, i32
  }
}

</mosaic_0001>

<llo_original>
// kernel: tpu_custom_call.1
$region0: #{tpu_custom_call.1}
  #allocation0 [shape = 'u32[]', space=smem, size = 0x4, offset = 0x4, fixed_abs, tag = 'smem constant byte address 0x4 - core index']
  #allocation1 [shape = 'u32[144,128]{1,0:T(1,128)}', space=vmem, size = 0x12000, scoped, tag = 'internal scratch']
  %s0 = inlined_call_operand.vmem [shape: f32[1,200,138], index: 0, kind: input, shape index: {}]
  %s1 = inlined_call_operand.vmem [shape: f32[200,1], index: 1, kind: input, shape index: {}]
  %s2 = inlined_call_operand.vmem [shape: bf16[138,128], index: 2, kind: input, shape index: {}]
  %s3 = inlined_call_operand.vmem [shape: f32[1,128], index: 3, kind: input, shape index: {}]
  %s4 = inlined_call_operand.vmem [shape: f32[1,128], index: 4, kind: input, shape index: {}]
  %s5 = inlined_call_operand.vmem [shape: bf16[128,128], index: 5, kind: input, shape index: {}]
  %s6 = inlined_call_operand.vmem [shape: f32[1,128], index: 6, kind: input, shape index: {}]
  %s7 = inlined_call_operand.vmem [shape: f32[2,128], index: 7, kind: input, shape index: {}]
  %s8 = inlined_call_operand.vmem [shape: f32[2,1], index: 8, kind: input, shape index: {}]
  %s9 = inlined_call_operand.hbm [shape: f32[2,200], index: 9, kind: output, shape index: {}]
  %s10 = sld [smem:[#allocation0]]
  $region69: #{tpu_custom_call.1} parent=0
    _
  %s12 = ssub.s32 1, %s10
  %s13 = scalar_select 0, %s12, %s10
  $region1: #{tpu_custom_call.1} parent=0
    #allocation2 [shape = 'u8[2048]{0}', space=vmem, size = 0x800, scoped, tag = 'output window, operand 0']
    #allocation3 [shape = 's32[2]{0}', space=sflag, size = 0x8, scoped, tag = 'scoped memory for tpu_custom_call.1']
    %14 = vsyncpa [#allocation3], 0
    %s15 = scalar_lea.sflag [#allocation3], 1
    %16 = vsyncpa %s15, 0
    loop: start=0, step=1, limit=4
    $region2: #{tpu_custom_call.1} parent=1 // loop_pre_header
      _
    $region3: #{tpu_custom_call.1} parent=1 // loop_header
      %s18 = sphi 0, %s22
      %p19 = scmp.ge.s32.totalorder %s18, 4
      %s28 = sphi 0, %s30
      %s31 = sphi 0, %s28
      %s32 = sphi 0, %s31
      %s48 = sphi 0, %s32
      %s54 = sphi 0, %s56
      %s57 = sphi 0, %s54
      %s58 = sphi 0, %s57
      %s74 = sphi 0, %s58
      %s78 = sphi 0, %s78
      %s80 = sphi 0, %s78
      %s81 = sphi 0, %s80
      %s95 = sphi 0, %s81
      %s99 = sphi 0, %s99
      %s101 = sphi 0, %s99
      %s102 = sphi 0, %s101
      %s116 = sphi 0, %s102
      %s120 = sphi 0, %s120
      %s122 = sphi 0, %s120
      %s123 = sphi 0, %s122
      %s137 = sphi 0, %s123
      %s141 = sphi 0, %s141
      %s143 = sphi 0, %s141
      %s144 = sphi 0, %s143
      %s158 = sphi 0, %s144
      %s162 = sphi 0, %s162
      %s164 = sphi 0, %s162
      %s165 = sphi 0, %s164
      %s179 = sphi 0, %s165
      %s183 = sphi 0, %s183
      %s185 = sphi 0, %s183
      %s186 = sphi 0, %s185
      %s200 = sphi 0, %s186
      %s204 = sphi 0, %s204
      %s206 = sphi 0, %s204
      %s207 = sphi 0, %s206
      %s221 = sphi 0, %s207
      %s227 = sphi 0, %s229
      %s230 = sphi 0, %s227
      %s231 = sphi 0, %s230
      %s247 = sphi 0, %s231
    $region4: #{tpu_custom_call.1} parent=1 // loop_header_branch
      %21 = sbr.rel (%p19) target = $region8
    $region5: #{tpu_custom_call.1} parent=1 // loop_body
      %s23 = ssub.s32 %s18, 1
      %s24 = ssub.s32 %s18, 2
      %s25 = sadd.s32 %s18, 1
      %s26 = ssub.s32 %s18, %s25
      %p27 = scmp.eq.s32.totalorder %s26, 0
      %s29 = sadd.s32 %s28, 1
      %s30 = scalar_select %p27, %s28, %s29
      %p33 = pneg %p27
      %p34 = scmp.eq.s32.totalorder %s18, 1
      %p35 = por %p33, %p34
      %p36 = scmp.ne.s32.totalorder %s28, %s31
      %p37 = scmp.eq.s32.totalorder %s18, 0
      %p38 = por %p36, %p37
      %p39 = scmp.ne.s32.totalorder %s28, %s31
      %p40 = scmp.eq.s32.totalorder %s23, 1
      %p41 = por %p39, %p40
      %p42 = scmp.ne.s32.totalorder %s31, %s32
      %p43 = scmp.eq.s32.totalorder %s23, 0
      %p44 = por %p42, %p43
      %p45 = scmp.ne.s32.totalorder %s31, %s32
      %p46 = scmp.eq.s32.totalorder %s24, 1
      %p47 = por %p45, %p46
      %p49 = scmp.ne.s32.totalorder %s32, %s48
      %p50 = scmp.eq.s32.totalorder %s24, 0
      %p51 = por %p49, %p50
      %s52 = ssub.s32 %s18, %s25
      %p53 = scmp.eq.s32.totalorder %s52, 0
      %s55 = sadd.s32 %s54, 1
      %s56 = scalar_select %p53, %s54, %s55
      %p59 = pneg %p53
      %p60 = scmp.eq.s32.totalorder %s18, 1
      %p61 = por %p59, %p60
      %p62 = scmp.ne.s32.totalorder %s54, %s57
      %p63 = scmp.eq.s32.totalorder %s18, 0
      %p64 = por %p62, %p63
      %p65 = scmp.ne.s32.totalorder %s54, %s57
      %p66 = scmp.eq.s32.totalorder %s23, 1
      %p67 = por %p65, %p66
      %p68 = scmp.ne.s32.totalorder %s57, %s58
      %p69 = scmp.eq.s32.totalorder %s23, 0
      %p70 = por %p68, %p69
      %p71 = scmp.ne.s32.totalorder %s57, %s58
      %p72 = scmp.eq.s32.totalorder %s24, 1
      %p73 = por %p71, %p72
      %p75 = scmp.ne.s32.totalorder %s58, %s74
      %p76 = scmp.eq.s32.totalorder %s24, 0
      %p77 = por %p75, %p76
      %s79 = sadd.s32 %s78, 1
      %p82 = scmp.eq.s32.totalorder %s18, 1
      %p83 = scmp.ne.s32.totalorder %s78, %s80
      %p84 = scmp.eq.s32.totalorder %s18, 0
      %p85 = por %p83, %p84
      %p86 = scmp.ne.s32.totalorder %s78, %s80
      %p87 = scmp.eq.s32.totalorder %s23, 1
      %p88 = por %p86, %p87
      %p89 = scmp.ne.s32.totalorder %s80, %s81
      %p90 = scmp.eq.s32.totalorder %s23, 0
      %p91 = por %p89, %p90
      %p92 = scmp.ne.s32.totalorder %s80, %s81
      %p93 = scmp.eq.s32.totalorder %s24, 1
      %p94 = por %p92, %p93
      %p96 = scmp.ne.s32.totalorder %s81, %s95
      %p97 = scmp.eq.s32.totalorder %s24, 0
      %p98 = por %p96, %p97
      %s100 = sadd.s32 %s99, 1
      %p103 = scmp.eq.s32.totalorder %s18, 1
      %p104 = scmp.ne.s32.totalorder %s99, %s101
      %p105 = scmp.eq.s32.totalorder %s18, 0
      %p106 = por %p104, %p105
      %p107 = scmp.ne.s32.totalorder %s99, %s101
      %p108 = scmp.eq.s32.totalorder %s23, 1
      %p109 = por %p107, %p108
      %p110 = scmp.ne.s32.totalorder %s101, %s102
      %p111 = scmp.eq.s32.totalorder %s23, 0
      %p112 = por %p110, %p111
      %p113 = scmp.ne.s32.totalorder %s101, %s102
      %p114 = scmp.eq.s32.totalorder %s24, 1
      %p115 = por %p113, %p114
      %p117 = scmp.ne.s32.totalorder %s102, %s116
      %p118 = scmp.eq.s32.totalorder %s24, 0
      %p119 = por %p117, %p118
      %s121 = sadd.s32 %s120, 1
      %p124 = scmp.eq.s32.totalorder %s18, 1
      %p125 = scmp.ne.s32.totalorder %s120, %s122
      %p126 = scmp.eq.s32.totalorder %s18, 0
      %p127 = por %p125, %p126
      %p128 = scmp.ne.s32.totalorder %s120, %s122
      %p129 = scmp.eq.s32.totalorder %s23, 1
      %p130 = por %p128, %p129
      %p131 = scmp.ne.s32.totalorder %s122, %s123
      %p132 = scmp.eq.s32.totalorder %s23, 0
      %p133 = por %p131, %p132
      %p134 = scmp.ne.s32.totalorder %s122, %s123
      %p135 = scmp.eq.s32.totalorder %s24, 1
      %p136 = por %p134, %p135
      %p138 = scmp.ne.s32.totalorder %s123, %s137
      %p139 = scmp.eq.s32.totalorder %s24, 0
      %p140 = por %p138, %p139
      %s142 = sadd.s32 %s141, 1
      %p145 = scmp.eq.s32.totalorder %s18, 1
      %p146 = scmp.ne.s32.totalorder %s141, %s143
      %p147 = scmp.eq.s32.totalorder %s18, 0
      %p148 = por %p146, %p147
      %p149 = scmp.ne.s32.totalorder %s141, %s143
      %p150 = scmp.eq.s32.totalorder %s23, 1
      %p151 = por %p149, %p150
      %p152 = scmp.ne.s32.totalorder %s143, %s144
      %p153 = scmp.eq.s32.totalorder %s23, 0
      %p154 = por %p152, %p153
      %p155 = scmp.ne.s32.totalorder %s143, %s144
      %p156 = scmp.eq.s32.totalorder %s24, 1
      %p157 = por %p155, %p156
      %p159 = scmp.ne.s32.totalorder %s144, %s158
      %p160 = scmp.eq.s32.totalorder %s24, 0
      %p161 = por %p159, %p160
      %s163 = sadd.s32 %s162, 1
      %p166 = scmp.eq.s32.totalorder %s18, 1
      %p167 = scmp.ne.s32.totalorder %s162, %s164
      %p168 = scmp.eq.s32.totalorder %s18, 0
      %p169 = por %p167, %p168
      %p170 = scmp.ne.s32.totalorder %s162, %s164
      %p171 = scmp.eq.s32.totalorder %s23, 1
      %p172 = por %p170, %p171
      %p173 = scmp.ne.s32.totalorder %s164, %s165
      %p174 = scmp.eq.s32.totalorder %s23, 0
      %p175 = por %p173, %p174
      %p176 = scmp.ne.s32.totalorder %s164, %s165
      %p177 = scmp.eq.s32.totalorder %s24, 1
      %p178 = por %p176, %p177
      %p180 = scmp.ne.s32.totalorder %s165, %s179
      %p181 = scmp.eq.s32.totalorder %s24, 0
      %p182 = por %p180, %p181
      %s184 = sadd.s32 %s183, 1
      %p187 = scmp.eq.s32.totalorder %s18, 1
      %p188 = scmp.ne.s32.totalorder %s183, %s185
      %p189 = scmp.eq.s32.totalorder %s18, 0
      %p190 = por %p188, %p189
      %p191 = scmp.ne.s32.totalorder %s183, %s185
      %p192 = scmp.eq.s32.totalorder %s23, 1
      %p193 = por %p191, %p192
      %p194 = scmp.ne.s32.totalorder %s185, %s186
      %p195 = scmp.eq.s32.totalorder %s23, 0
      %p196 = por %p194, %p195
      %p197 = scmp.ne.s32.totalorder %s185, %s186
      %p198 = scmp.eq.s32.totalorder %s24, 1
      %p199 = por %p197, %p198
      %p201 = scmp.ne.s32.totalorder %s186, %s200
      %p202 = scmp.eq.s32.totalorder %s24, 0
      %p203 = por %p201, %p202
      %s205 = sadd.s32 %s204, 1
      %p208 = scmp.eq.s32.totalorder %s18, 1
      %p209 = scmp.ne.s32.totalorder %s204, %s206
      %p210 = scmp.eq.s32.totalorder %s18, 0
      %p211 = por %p209, %p210
      %p212 = scmp.ne.s32.totalorder %s204, %s206
      %p213 = scmp.eq.s32.totalorder %s23, 1
      %p214 = por %p212, %p213
      %p215 = scmp.ne.s32.totalorder %s206, %s207
      %p216 = scmp.eq.s32.totalorder %s23, 0
      %p217 = por %p215, %p216
      %p218 = scmp.ne.s32.totalorder %s206, %s207
      %p219 = scmp.eq.s32.totalorder %s24, 1
      %p220 = por %p218, %p219
      %p222 = scmp.ne.s32.totalorder %s207, %s221
      %p223 = scmp.eq.s32.totalorder %s24, 0
      %p224 = por %p222, %p223
      %s225 = ssub.s32 %s18, %s25
      %p226 = scmp.eq.s32.totalorder %s225, 0
      %s228 = sadd.s32 %s227, 1
      %s229 = scalar_select %p226, %s227, %s228
      %p232 = pneg %p226
      %p233 = scmp.eq.s32.totalorder %s18, 1
      %p234 = por %p232, %p233
      %p235 = scmp.ne.s32.totalorder %s227, %s230
      %p236 = scmp.eq.s32.totalorder %s18, 0
      %p237 = por %p235, %p236
      %p238 = scmp.ne.s32.totalorder %s227, %s230
      %p239 = scmp.eq.s32.totalorder %s23, 1
      %p240 = por %p238, %p239
      %p241 = scmp.ne.s32.totalorder %s230, %s231
      %p242 = scmp.eq.s32.totalorder %s23, 0
      %p243 = por %p241, %p242
      %p244 = scmp.ne.s32.totalorder %s230, %s231
      %p245 = scmp.eq.s32.totalorder %s24, 1
      %p246 = por %p244, %p245
      %p248 = scmp.ne.s32.totalorder %s231, %s247
      %p249 = scmp.eq.s32.totalorder %s24, 0
      %p250 = por %p248, %p249
      %p251 = scmp.le.s32.totalorder 1, %s18
      %p252 = scmp.lt.s32.totalorder %s18, 3
      %p253 = pnand %p251, %p252
      %p254 = pneg %p253
      // Predicated region
      $region9: #{tpu_custom_call.1} parent=5 // pred_check
        _
      $region10: #{tpu_custom_call.1} parent=5 // pred_check_branch
        %256 = sbr.rel (%p253) target = $region12
      $region11: #{tpu_custom_call.1} parent=5 // pred_region
        %s257 = ssub.s32 %s18, 1
        // Predicated region
        $region13: #{tpu_custom_call.1} parent=11 // pred_check
          %p258 = pneg %p91
        $region14: #{tpu_custom_call.1} parent=11 // pred_check_branch
          %260 = sbr.rel (%p258) target = $region16
        $region15: #{tpu_custom_call.1} parent=11 // pred_region
          _
        $region16: #{tpu_custom_call.1} parent=11 // pred_fallthru
          _
        // Predicated region
        $region17: #{tpu_custom_call.1} parent=11 // pred_check
          %p261 = pneg %p112
        $region18: #{tpu_custom_call.1} parent=11 // pred_check_branch
          %263 = sbr.rel (%p261) target = $region20
        $region19: #{tpu_custom_call.1} parent=11 // pred_region
          _
        $region20: #{tpu_custom_call.1} parent=11 // pred_fallthru
          _
        // Predicated region
        $region21: #{tpu_custom_call.1} parent=11 // pred_check
          %p264 = pneg %p133
        $region22: #{tpu_custom_call.1} parent=11 // pred_check_branch
          %266 = sbr.rel (%p264) target = $region24
        $region23: #{tpu_custom_call.1} parent=11 // pred_region
          _
        $region24: #{tpu_custom_call.1} parent=11 // pred_fallthru
          _
        // Predicated region
        $region25: #{tpu_custom_call.1} parent=11 // pred_check
          %p267 = pneg %p154
        $region26: #{tpu_custom_call.1} parent=11 // pred_check_branch
          %269 = sbr.rel (%p267) target = $region28
        $region27: #{tpu_custom_call.1} parent=11 // pred_region
          _
        $region28: #{tpu_custom_call.1} parent=11 // pred_fallthru
          _
        // Predicated region
        $region29: #{tpu_custom_call.1} parent=11 // pred_check
          %p270 = pneg %p175
        $region30: #{tpu_custom_call.1} parent=11 // pred_check_branch
          %272 = sbr.rel (%p270) target = $region32
        $region31: #{tpu_custom_call.1} parent=11 // pred_region
          _
        $region32: #{tpu_custom_call.1} parent=11 // pred_fallthru
          _
        // Predicated region
        $region33: #{tpu_custom_call.1} parent=11 // pred_check
          %p273 = pneg %p196
        $region34: #{tpu_custom_call.1} parent=11 // pred_check_branch
          %275 = sbr.rel (%p273) target = $region36
        $region35: #{tpu_custom_call.1} parent=11 // pred_region
          _
        $region36: #{tpu_custom_call.1} parent=11 // pred_fallthru
          _
        // Predicated region
        $region37: #{tpu_custom_call.1} parent=11 // pred_check
          %p276 = pneg %p217
        $region38: #{tpu_custom_call.1} parent=11 // pred_check_branch
          %278 = sbr.rel (%p276) target = $region40
        $region39: #{tpu_custom_call.1} parent=11 // pred_region
          _
        $region40: #{tpu_custom_call.1} parent=11 // pred_fallthru
          _
      $region12: #{tpu_custom_call.1} parent=5 // pred_fallthru
        _
      %p279 = scmp.lt.s32.totalorder %s18, 2
      // Predicated region
      $region41: #{tpu_custom_call.1} parent=5 // pred_check
        %p280 = pneg %p279
      $region42: #{tpu_custom_call.1} parent=5 // pred_check_branch
        %282 = sbr.rel (%p280) target = $region44
      $region43: #{tpu_custom_call.1} parent=5 // pred_region
        // Predicated region
        $region45: #{tpu_custom_call.1} parent=43 // pred_check
          %p283 = pneg %p38
        $region46: #{tpu_custom_call.1} parent=43 // pred_check_branch
          %285 = sbr.rel (%p283) target = $region48
        $region47: #{tpu_custom_call.1} parent=43 // pred_region
          %s286 = smul.u32 16, %s18
          %s287 = ssub.s32 25, %s286
          %p288 = scmp.lt.s32.totalorder %s287, 16
          %s289 = scalar_select %p288, %s287, 16
          %s290 = smul.u32 128, %s289
          %s291 = smul.u32 %s290, 2
          %p292 = scmp.lt.s32.totalorder %s286, 24
          %s293 = scalar_select %p292, %s286, 24
          %s294 = smul.addr %s293, 2
          %s295 = smul.addr %s294, 8
          %s296 = scalar_lea.vmem %s0, %s295
          %s297 = smul.u32 16, %s18
          %s298 = ssub.s32 25, %s297
          %p299 = scmp.lt.s32.totalorder %s298, 16
          %s300 = scalar_select %p299, %s298, 16
          %s301 = smul.u32 128, %s300
          %s302 = smul.u32 %s301, 2
        $region48: #{tpu_custom_call.1} parent=43 // pred_fallthru
          _
        // Predicated region
        $region49: #{tpu_custom_call.1} parent=43 // pred_check
          %p303 = pneg %p64
        $region50: #{tpu_custom_call.1} parent=43 // pred_check_branch
          %305 = sbr.rel (%p303) target = $region52
        $region51: #{tpu_custom_call.1} parent=43 // pred_region
          %s306 = smul.u32 16, %s18
          %s307 = ssub.s32 25, %s306
          %p308 = scmp.lt.s32.totalorder %s307, 16
          %s309 = scalar_select %p308, %s307, 16
          %s310 = smul.u32 128, %s309
          %p311 = scmp.lt.s32.totalorder %s306, 24
          %s312 = scalar_select %p311, %s306, 24
          %s313 = smul.addr %s312, 8
          %s314 = scalar_lea.vmem %s1, %s313
          %s315 = smul.u32 16, %s18
          %s316 = ssub.s32 25, %s315
          %p317 = scmp.lt.s32.totalorder %s316, 16
          %s318 = scalar_select %p317, %s316, 16
          %s319 = smul.u32 128, %s318
        $region52: #{tpu_custom_call.1} parent=43 // pred_fallthru
          _
      $region44: #{tpu_custom_call.1} parent=5 // pred_fallthru
        _
      %p320 = scmp.le.s32.totalorder 1, %s18
      %p321 = scmp.lt.s32.totalorder %s18, 3
      %p322 = pnand %p320, %p321
      %p323 = pneg %p322
      // Predicated region
      $region53: #{tpu_custom_call.1} parent=5 // pred_check
        _
      $region54: #{tpu_custom_call.1} parent=5 // pred_check_branch
        %325 = sbr.rel (%p322) target = $region56
      $region55: #{tpu_custom_call.1} parent=5 // pred_region
        %s326 = ssub.s32 %s18, 1
        %s327 = smul.u32 16, %s23
        %s328 = ssub.s32 25, %s327
        %p329 = scmp.lt.s32.totalorder %s328, 16
        %s330 = scalar_select %p329, %s328, 16
        %s331 = smul.u32 128, %s330
        %s332 = smul.u32 %s331, 2
        %p333 = scmp.lt.s32.totalorder %s327, 24
        %s334 = scalar_select %p333, %s327, 24
        %s335 = smul.addr %s334, 2
        %s336 = smul.addr %s335, 8
        %s337 = scalar_lea.vmem %s0, %s336
        %p338 = pneg %p44
        %p339 = pneg %p41
        %s340 = smul.u32 16, %s23
        %s341 = ssub.s32 25, %s340
        %p342 = scmp.lt.s32.totalorder %s341, 16
        %s343 = scalar_select %p342, %s341, 16
        %s344 = smul.u32 128, %s343
        %p345 = scmp.lt.s32.totalorder %s340, 24
        %s346 = scalar_select %p345, %s340, 24
        %s347 = smul.addr %s346, 8
        %s348 = scalar_lea.vmem %s1, %s347
        %p349 = pneg %p70
        %p350 = pneg %p67
        %p351 = pneg %p91
        %p352 = pneg %p88
        %p353 = pneg %p112
        %p354 = pneg %p109
        %p355 = pneg %p133
        %p356 = pneg %p130
        %p357 = pneg %p154
        %p358 = pneg %p151
        %p359 = pneg %p175
        %p360 = pneg %p172
        %p361 = pneg %p196
        %p362 = pneg %p193
        %p363 = pneg %p217
        %p364 = pneg %p214
        %p365 = pneg %p243
        %p366 = pneg %p240
        %s367 = sand.u32 %s230, 1
        %s368 = scalar_lea.sflag [#allocation3], %s367
        %s369 = sand.u32 %s230, 1
        %s370 = smul.addr %s369, 2
        %s371 = scalar_lea.vmem [#allocation2], %s370
        %s372 = smul.u32 16, %s23
        %s373 = ssub.s32 25, %s372
        %p374 = scmp.lt.s32.totalorder %s373, 16
        %s375 = scalar_select %p374, %s373, 16
        %s376 = smul.u32 128, %s375
        %s377 = smul.u32 %s376, 2
        %p378 = scmp.lt.s32.totalorder %s372, 24
        %s379 = scalar_select %p378, %s372, 24
        %s380 = smul.addr %s379, 2
        %s381 = smul.addr %s380, 8
        %s382 = scalar_lea.vmem %s0, %s381
        %s383 = smul.u32 16, %s23
        %s384 = ssub.s32 25, %s383
        %p385 = scmp.lt.s32.totalorder %s384, 16
        %s386 = scalar_select %p385, %s384, 16
        %s387 = smul.u32 128, %s386
        %s388 = smul.u32 %s387, 2
        %s389 = smul.u32 16, %s23
        %s390 = ssub.s32 25, %s389
        %p391 = scmp.lt.s32.totalorder %s390, 16
        %s392 = scalar_select %p391, %s390, 16
        %s393 = smul.u32 128, %s392
        %p394 = scmp.lt.s32.totalorder %s389, 24
        %s395 = scalar_select %p394, %s389, 24
        %s396 = smul.addr %s395, 8
        %s397 = scalar_lea.vmem %s1, %s396
        %s398 = smul.u32 16, %s23
        %s399 = ssub.s32 25, %s398
        %p400 = scmp.lt.s32.totalorder %s399, 16
        %s401 = scalar_select %p400, %s399, 16
        %s402 = smul.u32 128, %s401
        %v404 = vld [vmem:[%s382] sm:$0xff]
        %v405 = vld [vmem:[%s382 + $0x8] sm:$0xff]
        %v406 = vld [vmem:[%s382 + $0x10] sm:$0xff]
        %v407 = vld [vmem:[%s382 + $0x18] sm:$0xff]
        %v408 = vld [vmem:[%s382 + $0x20] sm:$0xff]
        %v409 = vld [vmem:[%s382 + $0x28] sm:$0xff]
        %v410 = vld [vmem:[%s382 + $0x30] sm:$0xff]
        %v411 = vld [vmem:[%s382 + $0x38] sm:$0xff]
        %v412 = vld [vmem:[%s382 + $0x40] sm:$0xff]
        %v413 = vld [vmem:[%s382 + $0x48] sm:$0xff]
        %v414 = vld [vmem:[%s382 + $0x50] sm:$0xff]
        %v415 = vld [vmem:[%s382 + $0x58] sm:$0xff]
        %v416 = vld [vmem:[%s382 + $0x60] sm:$0xff]
        %v417 = vld [vmem:[%s382 + $0x68] sm:$0xff]
        %v418 = vld [vmem:[%s382 + $0x70] sm:$0xff]
        %v419 = vld [vmem:[%s382 + $0x78] sm:$0xff]
        %v420 = vld [vmem:[%s382 + $0x80] sm:$0xff]
        %v421 = vld [vmem:[%s382 + $0x88] sm:$0xff]
        %v422 = vld [vmem:[%s382 + $0x90] sm:$0xff]
        %v423 = vld [vmem:[%s382 + $0x98] sm:$0xff]
        %v424 = vld [vmem:[%s382 + $0xa0] sm:$0xff]
        %v425 = vld [vmem:[%s382 + $0xa8] sm:$0xff]
        %v426 = vld [vmem:[%s382 + $0xb0] sm:$0xff]
        %v427 = vld [vmem:[%s382 + $0xb8] sm:$0xff]
        %v428 = vld [vmem:[%s382 + $0xc0] sm:$0xff]
        %v429 = vld [vmem:[%s382 + $0xc8] sm:$0xff]
        %v430 = vld [vmem:[%s382 + $0xd0] sm:$0xff]
        %v431 = vld [vmem:[%s382 + $0xd8] sm:$0xff]
        %v432 = vld [vmem:[%s382 + $0xe0] sm:$0xff]
        %v433 = vld [vmem:[%s382 + $0xe8] sm:$0xff]
        %v434 = vld [vmem:[%s382 + $0xf0] sm:$0xff]
        %v435 = vld [vmem:[%s382 + $0xf8] sm:$0xff]
        %v436 = vpack.c.bf16 %v406, %v404
        %v437 = vpack.c.bf16 %v407, %v405
        %v438 = vpack.c.bf16 %v410, %v408
        %v439 = vpack.c.bf16 %v411, %v409
        %v440 = vpack.c.bf16 %v414, %v412
        %v441 = vpack.c.bf16 %v415, %v413
        %v442 = vpack.c.bf16 %v418, %v416
        %v443 = vpack.c.bf16 %v419, %v417
        %v444 = vpack.c.bf16 %v422, %v420
        %v445 = vpack.c.bf16 %v423, %v421
        %v446 = vpack.c.bf16 %v426, %v424
        %v447 = vpack.c.bf16 %v427, %v425
        %v448 = vpack.c.bf16 %v430, %v428
        %v449 = vpack.c.bf16 %v431, %v429
        %v450 = vpack.c.bf16 %v434, %v432
        %v451 = vpack.c.bf16 %v435, %v433
        %v452 = vld [vmem:[%s397] sm:$0xff]
        %v453 = vld [vmem:[%s397 + $0x8] sm:$0xff]
        %v454 = vld [vmem:[%s397 + $0x10] sm:$0xff]
        %v455 = vld [vmem:[%s397 + $0x18] sm:$0xff]
        %v456 = vld [vmem:[%s397 + $0x20] sm:$0xff]
        %v457 = vld [vmem:[%s397 + $0x28] sm:$0xff]
        %v458 = vld [vmem:[%s397 + $0x30] sm:$0xff]
        %v459 = vld [vmem:[%s397 + $0x38] sm:$0xff]
        %v460 = vld [vmem:[%s397 + $0x40] sm:$0xff]
        %v461 = vld [vmem:[%s397 + $0x48] sm:$0xff]
        %v462 = vld [vmem:[%s397 + $0x50] sm:$0xff]
        %v463 = vld [vmem:[%s397 + $0x58] sm:$0xff]
        %v464 = vld [vmem:[%s397 + $0x60] sm:$0xff]
        %v465 = vld [vmem:[%s397 + $0x68] sm:$0xff]
        %v466 = vld [vmem:[%s397 + $0x70] sm:$0xff]
        %v467 = vld [vmem:[%s397 + $0x78] sm:$0xff]
        %v468 = vld [vmem:[%s2] sm:$0xf]
        %v469 = vld [vmem:[%s2 + $0x4] sm:$0xf]
        %v470 = vld [vmem:[%s2 + $0x8] sm:$0xf]
        %v471 = vld [vmem:[%s2 + $0xc] sm:$0xf]
        %v472 = vld [vmem:[%s2 + $0x10] sm:$0xf]
        %v473 = vld [vmem:[%s2 + $0x14] sm:$0xf]
        %v474 = vld [vmem:[%s2 + $0x18] sm:$0xf]
        %v475 = vld [vmem:[%s2 + $0x1c] sm:$0xf]
        %v476 = vld [vmem:[%s2 + $0x20] sm:$0xf]
        %v477 = vld [vmem:[%s2 + $0x24] sm:$0xf]
        %v478 = vld [vmem:[%s2 + $0x28] sm:$0xf]
        %v479 = vld [vmem:[%s2 + $0x2c] sm:$0xf]
        %v480 = vld [vmem:[%s2 + $0x30] sm:$0xf]
        %v481 = vld [vmem:[%s2 + $0x34] sm:$0xf]
        %v482 = vld [vmem:[%s2 + $0x38] sm:$0xf]
        %v483 = vld [vmem:[%s2 + $0x3c] sm:$0xf]
        %v484 = vld [vmem:[%s2 + $0x40] sm:$0xf]
        %v485 = vld [vmem:[%s2 + $0x44] sm:$0x1]
        %v486 = vld [vmem:[%s3] sm:$0x1]
        %488 = vset.pattern.permute.xlu0 0
        %489 = vperm.xlu0 %488, %v452
        %v490 = vpop.permute.xlu0 %489
        %493 = vset.pattern.permute.xlu0 0
        %494 = vperm.xlu0 %493, %v453
        %v495 = vpop.permute.xlu0 %494
        %498 = vset.pattern.permute.xlu0 0
        %499 = vperm.xlu0 %498, %v454
        %v500 = vpop.permute.xlu0 %499
        %503 = vset.pattern.permute.xlu0 0
        %504 = vperm.xlu0 %503, %v455
        %v505 = vpop.permute.xlu0 %504
        %508 = vset.pattern.permute.xlu0 0
        %509 = vperm.xlu0 %508, %v456
        %v510 = vpop.permute.xlu0 %509
        %513 = vset.pattern.permute.xlu0 0
        %514 = vperm.xlu0 %513, %v457
        %v515 = vpop.permute.xlu0 %514
        %518 = vset.pattern.permute.xlu0 0
        %519 = vperm.xlu0 %518, %v458
        %v520 = vpop.permute.xlu0 %519
        %523 = vset.pattern.permute.xlu0 0
        %524 = vperm.xlu0 %523, %v459
        %v525 = vpop.permute.xlu0 %524
        %528 = vset.pattern.permute.xlu0 0
        %529 = vperm.xlu0 %528, %v460
        %v530 = vpop.permute.xlu0 %529
        %533 = vset.pattern.permute.xlu0 0
        %534 = vperm.xlu0 %533, %v461
        %v535 = vpop.permute.xlu0 %534
        %538 = vset.pattern.permute.xlu0 0
        %539 = vperm.xlu0 %538, %v462
        %v540 = vpop.permute.xlu0 %539
        %543 = vset.pattern.permute.xlu0 0
        %544 = vperm.xlu0 %543, %v463
        %v545 = vpop.permute.xlu0 %544
        %548 = vset.pattern.permute.xlu0 0
        %549 = vperm.xlu0 %548, %v464
        %v550 = vpop.permute.xlu0 %549
        %553 = vset.pattern.permute.xlu0 0
        %554 = vperm.xlu0 %553, %v465
        %v555 = vpop.permute.xlu0 %554
        %558 = vset.pattern.permute.xlu0 0
        %559 = vperm.xlu0 %558, %v466
        %v560 = vpop.permute.xlu0 %559
        %563 = vset.pattern.permute.xlu0 0
        %564 = vperm.xlu0 %563, %v467
        %v565 = vpop.permute.xlu0 %564
        %v568 = vlaneseq
        %v569 = vshrl.u32 %v568, 7
        %v570 = vsub.s32 0, %v569
        %v571 = vrot.slane %v486, %v570
        %v573 = vmul.f32 %v490, %v571
        %v574 = vmul.f32 %v495, %v571
        %v575 = vmul.f32 %v500, %v571
        %v576 = vmul.f32 %v505, %v571
        %v577 = vmul.f32 %v510, %v571
        %v578 = vmul.f32 %v515, %v571
        %v579 = vmul.f32 %v520, %v571
        %v580 = vmul.f32 %v525, %v571
        %v581 = vmul.f32 %v530, %v571
        %v582 = vmul.f32 %v535, %v571
        %v583 = vmul.f32 %v540, %v571
        %v584 = vmul.f32 %v545, %v571
        %v585 = vmul.f32 %v550, %v571
        %v586 = vmul.f32 %v555, %v571
        %v587 = vmul.f32 %v560, %v571
        %v588 = vmul.f32 %v565, %v571
        %v607 = vunpack.c.l.b16 %v468
        %v608 = vunpack.c.l.b16 %v469
        %v609 = vunpack.c.l.b16 %v470
        %v610 = vunpack.c.l.b16 %v471
        %v611 = vunpack.c.l.b16 %v472
        %v612 = vunpack.c.l.b16 %v473
        %v613 = vunpack.c.l.b16 %v474
        %v614 = vunpack.c.l.b16 %v475
        %v615 = vunpack.c.l.b16 %v476
        %v616 = vunpack.c.l.b16 %v477
        %v617 = vunpack.c.l.b16 %v478
        %v618 = vunpack.c.l.b16 %v479
        %v619 = vunpack.c.l.b16 %v480
        %v620 = vunpack.c.l.b16 %v481
        %v621 = vunpack.c.l.b16 %v482
        %v622 = vunpack.c.l.b16 %v483
        %v623 = vunpack.c.l.b16 %v484
        %v624 = vunpack.c.l.b16 %v485
        %v625 = vpack.c.b16 %v608, %v607
        %v626 = vpack.c.b16 %v610, %v609
        %v627 = vpack.c.b16 %v612, %v611
        %v628 = vpack.c.b16 %v614, %v613
        %v629 = vpack.c.b16 %v616, %v615
        %v630 = vpack.c.b16 %v618, %v617
        %v631 = vpack.c.b16 %v620, %v619
        %v632 = vpack.c.b16 %v622, %v621
        %v633 = vpack.c.b16 %v624, %v623
        %vm642 = vcmask 80896
        %v644 = vsel %vm642, %v437, 0
        %v647 = vsel %vm642, %v439, 0
        %v650 = vsel %vm642, %v441, 0
        %v653 = vsel %vm642, %v443, 0
        %v656 = vsel %vm642, %v445, 0
        %v659 = vsel %vm642, %v447, 0
        %v662 = vsel %vm642, %v449, 0
        %v665 = vsel %vm642, %v451, 0
        %vm667 = vcmask 1044480
        %v669 = vsel %vm667, %v633, 0
        %671 = vmatprep.subr.bf16.mxu0 0
        %672 = vmatpush1.bf16.msra.mxu0 %v625
        %673 = vmatprep.subr.bf16.mxu0 0
        %674 = vmatpush1.bf16.msra.mxu0 %v626
        %675 = vmatprep.subr.bf16.mxu0 0
        %676 = vmatpush1.bf16.msra.mxu0 %v627
        %677 = vmatprep.subr.bf16.mxu0 0
        %678 = vmatpush1.bf16.msra.mxu0 %v628
        %679 = vmatprep.subr.bf16.mxu0 0
        %680 = vmatpush1.bf16.msra.mxu0 %v629
        %681 = vmatprep.subr.bf16.mxu0 0
        %682 = vmatpush1.bf16.msra.mxu0 %v630
        %683 = vmatprep.subr.bf16.mxu0 0
        %684 = vmatpush1.bf16.msra.mxu0 %v631
        %685 = vmatprep.subr.bf16.mxu0 0
        %686 = vmatpush1.bf16.msra.mxu0 %v632
        %687 = vmatprep.subr.bf16.mxu0 0
        %688 = vmatpush1.bf16.msra.mxu0 %v669
        %689 = vmatprep.subr.bf16.mxu0 0
        %690 = vmatpush1.bf16.msra.mxu0 0
        %691 = vmatprep.subr.bf16.mxu0 0
        %692 = vmatpush1.bf16.msra.mxu0 0
        %693 = vmatprep.subr.bf16.mxu0 0
        %694 = vmatpush1.bf16.msra.mxu0 0
        %695 = vmatprep.subr.bf16.mxu0 0
        %696 = vmatpush1.bf16.msra.mxu0 0
        %697 = vmatprep.subr.bf16.mxu0 0
        %698 = vmatpush1.bf16.msra.mxu0 0
        %699 = vmatprep.subr.bf16.mxu0 0
        %700 = vmatpush1.bf16.msra.mxu0 0
        %701 = vmatprep.subr.bf16.mxu0 0
        %702 = vmatpush1.bf16.msra.mxu0 0
        %703 = vmatprep.mubr.bf16.mxu0 %v644
        %704 = vmatmul.mubr.bf16.gmra.mrb[0].mxu0 %v436
        %v705 = vpop.f32.mrb[0].mxu0
        %v706 = vadd.f32 %v573, %v705
        %v707 = vpop.f32.mrb[0].mxu0
        %v708 = vpop.f32.mrb[0].mxu0
        %v709 = vadd.f32 %v574, %v708
        %v710 = vpop.f32.mrb[0].mxu0
        %711 = vmatprep.mubr.bf16.mxu0 %v647
        %712 = vmatmul.mubr.bf16.gmra.mrb[0].mxu0 %v438
        %v713 = vpop.f32.mrb[0].mxu0
        %v714 = vadd.f32 %v575, %v713
        %v715 = vpop.f32.mrb[0].mxu0
        %v716 = vpop.f32.mrb[0].mxu0
        %v717 = vadd.f32 %v576, %v716
        %v718 = vpop.f32.mrb[0].mxu0
        %719 = vmatprep.mubr.bf16.mxu0 %v650
        %720 = vmatmul.mubr.bf16.gmra.mrb[0].mxu0 %v440
        %v721 = vpop.f32.mrb[0].mxu0
        %v722 = vadd.f32 %v577, %v721
        %v723 = vpop.f32.mrb[0].mxu0
        %v724 = vpop.f32.mrb[0].mxu0
        %v725 = vadd.f32 %v578, %v724
        %v726 = vpop.f32.mrb[0].mxu0
        %727 = vmatprep.mubr.bf16.mxu0 %v653
        %728 = vmatmul.mubr.bf16.gmra.mrb[0].mxu0 %v442
        %v729 = vpop.f32.mrb[0].mxu0
        %v730 = vadd.f32 %v579, %v729
        %v731 = vpop.f32.mrb[0].mxu0
        %v732 = vpop.f32.mrb[0].mxu0
        %v733 = vadd.f32 %v580, %v732
        %v734 = vpop.f32.mrb[0].mxu0
        %735 = vmatprep.mubr.bf16.mxu0 %v656
        %736 = vmatmul.mubr.bf16.gmra.mrb[0].mxu0 %v444
        %v737 = vpop.f32.mrb[0].mxu0
        %v738 = vadd.f32 %v581, %v737
        %v739 = vpop.f32.mrb[0].mxu0
        %v740 = vpop.f32.mrb[0].mxu0
        %v741 = vadd.f32 %v582, %v740
        %v742 = vpop.f32.mrb[0].mxu0
        %743 = vmatprep.mubr.bf16.mxu0 %v659
        %744 = vmatmul.mubr.bf16.gmra.mrb[0].mxu0 %v446
        %v745 = vpop.f32.mrb[0].mxu0
        %v746 = vadd.f32 %v583, %v745
        %v747 = vpop.f32.mrb[0].mxu0
        %v748 = vpop.f32.mrb[0].mxu0
        %v749 = vadd.f32 %v584, %v748
        %v750 = vpop.f32.mrb[0].mxu0
        %751 = vmatprep.mubr.bf16.mxu0 %v662
        %752 = vmatmul.mubr.bf16.gmra.mrb[0].mxu0 %v448
        %v753 = vpop.f32.mrb[0].mxu0
        %v754 = vadd.f32 %v585, %v753
        %v755 = vpop.f32.mrb[0].mxu0
        %v756 = vpop.f32.mrb[0].mxu0
        %v757 = vadd.f32 %v586, %v756
        %v758 = vpop.f32.mrb[0].mxu0
        %759 = vmatprep.mubr.bf16.mxu0 %v665
        %760 = vmatmul.mubr.bf16.gmra.mrb[0].mxu0 %v450
        %v761 = vpop.f32.mrb[0].mxu0
        %v762 = vadd.f32 %v587, %v761
        %v763 = vpop.f32.mrb[0].mxu0
        %v764 = vpop.f32.mrb[0].mxu0
        %v765 = vadd.f32 %v588, %v764
        %v766 = vpop.f32.mrb[0].mxu0
        %767 = vdwg.mxu0
        %v768 = vld [vmem:[%s4] sm:$0x1]
        %v770 = vlaneseq
        %v771 = vshrl.u32 %v770, 7
        %v772 = vsub.s32 0, %v771
        %v773 = vrot.slane %v768, %v772
        %v775 = vadd.f32 %v706, %v773
        %v776 = vadd.f32 %v709, %v773
        %v777 = vadd.f32 %v714, %v773
        %v778 = vadd.f32 %v717, %v773
        %v779 = vadd.f32 %v722, %v773
        %v780 = vadd.f32 %v725, %v773
        %v781 = vadd.f32 %v730, %v773
        %v782 = vadd.f32 %v733, %v773
        %v783 = vadd.f32 %v738, %v773
        %v784 = vadd.f32 %v741, %v773
        %v785 = vadd.f32 %v746, %v773
        %v786 = vadd.f32 %v749, %v773
        %v787 = vadd.f32 %v754, %v773
        %v788 = vadd.f32 %v757, %v773
        %v789 = vadd.f32 %v762, %v773
        %v790 = vadd.f32 %v765, %v773
        %v791 = vmax.f32 %v775, 0.0
        %v792 = vmax.f32 %v776, 0.0
        %v793 = vmax.f32 %v777, 0.0
        %v794 = vmax.f32 %v778, 0.0
        %v795 = vmax.f32 %v779, 0.0
        %v796 = vmax.f32 %v780, 0.0
        %v797 = vmax.f32 %v781, 0.0
        %v798 = vmax.f32 %v782, 0.0
        %v799 = vmax.f32 %v783, 0.0
        %v800 = vmax.f32 %v784, 0.0
        %v801 = vmax.f32 %v785, 0.0
        %v802 = vmax.f32 %v786, 0.0
        %v803 = vmax.f32 %v787, 0.0
        %v804 = vmax.f32 %v788, 0.0
        %v805 = vmax.f32 %v789, 0.0
        %v806 = vmax.f32 %v790, 0.0
        %v807 = vpack.c.bf16 %v792, %v791
        %v808 = vpack.c.bf16 %v794, %v793
        %v809 = vpack.c.bf16 %v796, %v795
        %v810 = vpack.c.bf16 %v798, %v797
        %v811 = vpack.c.bf16 %v800, %v799
        %v812 = vpack.c.bf16 %v802, %v801
        %v813 = vpack.c.bf16 %v804, %v803
        %v814 = vpack.c.bf16 %v806, %v805
        %v815 = vld [vmem:[%s5] sm:$0xf]
        %v816 = vld [vmem:[%s5 + $0x4] sm:$0xf]
        %v817 = vld [vmem:[%s5 + $0x8] sm:$0xf]
        %v818 = vld [vmem:[%s5 + $0xc] sm:$0xf]
        %v819 = vld [vmem:[%s5 + $0x10] sm:$0xf]
        %v820 = vld [vmem:[%s5 + $0x14] sm:$0xf]
        %v821 = vld [vmem:[%s5 + $0x18] sm:$0xf]
        %v822 = vld [vmem:[%s5 + $0x1c] sm:$0xf]
        %v823 = vld [vmem:[%s5 + $0x20] sm:$0xf]
        %v824 = vld [vmem:[%s5 + $0x24] sm:$0xf]
        %v825 = vld [vmem:[%s5 + $0x28] sm:$0xf]
        %v826 = vld [vmem:[%s5 + $0x2c] sm:$0xf]
        %v827 = vld [vmem:[%s5 + $0x30] sm:$0xf]
        %v828 = vld [vmem:[%s5 + $0x34] sm:$0xf]
        %v829 = vld [vmem:[%s5 + $0x38] sm:$0xf]
        %v830 = vld [vmem:[%s5 + $0x3c] sm:$0xf]
        %v831 = vld [vmem:[%s6] sm:$0x1]
        %v833 = vlaneseq
        %v834 = vshrl.u32 %v833, 7
        %v835 = vsub.s32 0, %v834
        %v836 = vrot.slane %v831, %v835
        %v854 = vunpack.c.l.b16 %v815
        %v855 = vunpack.c.l.b16 %v816
        %v856 = vunpack.c.l.b16 %v817
        %v857 = vunpack.c.l.b16 %v818
        %v858 = vunpack.c.l.b16 %v819
        %v859 = vunpack.c.l.b16 %v820
        %v860 = vunpack.c.l.b16 %v821
        %v861 = vunpack.c.l.b16 %v822
        %v862 = vunpack.c.l.b16 %v823
        %v863 = vunpack.c.l.b16 %v824
        %v864 = vunpack.c.l.b16 %v825
        %v865 = vunpack.c.l.b16 %v826
        %v866 = vunpack.c.l.b16 %v827
        %v867 = vunpack.c.l.b16 %v828
        %v868 = vunpack.c.l.b16 %v829
        %v869 = vunpack.c.l.b16 %v830
        %v870 = vpack.c.b16 %v855, %v854
        %v871 = vpack.c.b16 %v857, %v856
        %v872 = vpack.c.b16 %v859, %v858
        %v873 = vpack.c.b16 %v861, %v860
        %v874 = vpack.c.b16 %v863, %v862
        %v875 = vpack.c.b16 %v865, %v864
        %v876 = vpack.c.b16 %v867, %v866
        %v877 = vpack.c.b16 %v869, %v868
        %886 = vmatprep.subr.bf16.mxu0 0
        %887 = vmatpush1.bf16.msra.mxu0 %v870
        %888 = vmatprep.subr.bf16.mxu0 0
        %889 = vmatpush1.bf16.msra.mxu0 %v871
        %890 = vmatprep.subr.bf16.mxu0 0
        %891 = vmatpush1.bf16.msra.mxu0 %v872
        %892 = vmatprep.subr.bf16.mxu0 0
        %893 = vmatpush1.bf16.msra.mxu0 %v873
        %894 = vmatprep.subr.bf16.mxu0 0
        %895 = vmatpush1.bf16.msra.mxu0 %v874
        %896 = vmatprep.subr.bf16.mxu0 0
        %897 = vmatpush1.bf16.msra.mxu0 %v875
        %898 = vmatprep.subr.bf16.mxu0 0
        %899 = vmatpush1.bf16.msra.mxu0 %v876
        %900 = vmatprep.subr.bf16.mxu0 0
        %901 = vmatpush1.bf16.msra.mxu0 %v877
        %902 = vmatprep.subr.bf16.mxu0 0
        %903 = vmatpush1.bf16.msra.mxu0 0
        %904 = vmatprep.subr.bf16.mxu0 0
        %905 = vmatpush1.bf16.msra.mxu0 0
        %906 = vmatprep.subr.bf16.mxu0 0
        %907 = vmatpush1.bf16.msra.mxu0 0
        %908 = vmatprep.subr.bf16.mxu0 0
        %909 = vmatpush1.bf16.msra.mxu0 0
        %910 = vmatprep.subr.bf16.mxu0 0
        %911 = vmatpush1.bf16.msra.mxu0 0
        %912 = vmatprep.subr.bf16.mxu0 0
        %913 = vmatpush1.bf16.msra.mxu0 0
        %914 = vmatprep.subr.bf16.mxu0 0
        %915 = vmatpush1.bf16.msra.mxu0 0
        %916 = vmatprep.subr.bf16.mxu0 0
        %917 = vmatpush1.bf16.msra.mxu0 0
        %918 = vmatprep.mubr.bf16.mxu0 0
        %919 = vmatmul.mubr.bf16.gmra.mrb[0].mxu0 %v807
        %v920 = vpop.f32.mrb[0].mxu0
        %v921 = vadd.f32 %v836, %v920
        %v922 = vpop.f32.mrb[0].mxu0
        %v923 = vpop.f32.mrb[0].mxu0
        %v924 = vadd.f32 %v836, %v923
        %v925 = vpop.f32.mrb[0].mxu0
        %926 = vmatprep.mubr.bf16.mxu0 0
        %927 = vmatmul.mubr.bf16.gmra.mrb[0].mxu0 %v808
        %v928 = vpop.f32.mrb[0].mxu0
        %v929 = vadd.f32 %v836, %v928
        %v930 = vpop.f32.mrb[0].mxu0
        %v931 = vpop.f32.mrb[0].mxu0
        %v932 = vadd.f32 %v836, %v931
        %v933 = vpop.f32.mrb[0].mxu0
        %934 = vmatprep.mubr.bf16.mxu0 0
        %935 = vmatmul.mubr.bf16.gmra.mrb[0].mxu0 %v809
        %v936 = vpop.f32.mrb[0].mxu0
        %v937 = vadd.f32 %v836, %v936
        %v938 = vpop.f32.mrb[0].mxu0
        %v939 = vpop.f32.mrb[0].mxu0
        %v940 = vadd.f32 %v836, %v939
        %v941 = vpop.f32.mrb[0].mxu0
        %942 = vmatprep.mubr.bf16.mxu0 0
        %943 = vmatmul.mubr.bf16.gmra.mrb[0].mxu0 %v810
        %v944 = vpop.f32.mrb[0].mxu0
        %v945 = vadd.f32 %v836, %v944
        %v946 = vpop.f32.mrb[0].mxu0
        %v947 = vpop.f32.mrb[0].mxu0
        %v948 = vadd.f32 %v836, %v947
        %v949 = vpop.f32.mrb[0].mxu0
        %950 = vmatprep.mubr.bf16.mxu0 0
        %951 = vmatmul.mubr.bf16.gmra.mrb[0].mxu0 %v811
        %v952 = vpop.f32.mrb[0].mxu0
        %v953 = vadd.f32 %v836, %v952
        %v954 = vpop.f32.mrb[0].mxu0
        %v955 = vpop.f32.mrb[0].mxu0
        %v956 = vadd.f32 %v836, %v955
        %v957 = vpop.f32.mrb[0].mxu0
        %958 = vmatprep.mubr.bf16.mxu0 0
        %959 = vmatmul.mubr.bf16.gmra.mrb[0].mxu0 %v812
        %v960 = vpop.f32.mrb[0].mxu0
        %v961 = vadd.f32 %v836, %v960
        %v962 = vpop.f32.mrb[0].mxu0
        %v963 = vpop.f32.mrb[0].mxu0
        %v964 = vadd.f32 %v836, %v963
        %v965 = vpop.f32.mrb[0].mxu0
        %966 = vmatprep.mubr.bf16.mxu0 0
        %967 = vmatmul.mubr.bf16.gmra.mrb[0].mxu0 %v813
        %v968 = vpop.f32.mrb[0].mxu0
        %v969 = vadd.f32 %v836, %v968
        %v970 = vpop.f32.mrb[0].mxu0
        %v971 = vpop.f32.mrb[0].mxu0
        %v972 = vadd.f32 %v836, %v971
        %v973 = vpop.f32.mrb[0].mxu0
        %974 = vmatprep.mubr.bf16.mxu0 0
        %975 = vmatmul.mubr.bf16.gmra.mrb[0].mxu0 %v814
        %v976 = vpop.f32.mrb[0].mxu0
        %v977 = vadd.f32 %v836, %v976
        %v978 = vpop.f32.mrb[0].mxu0
        %v979 = vpop.f32.mrb[0].mxu0
        %v980 = vadd.f32 %v836, %v979
        %v981 = vpop.f32.mrb[0].mxu0
        %982 = vdwg.mxu0
        %v983 = vmax.f32 %v921, 0.0
        %v984 = vmax.f32 %v924, 0.0
        %v985 = vmax.f32 %v929, 0.0
        %v986 = vmax.f32 %v932, 0.0
        %v987 = vmax.f32 %v937, 0.0
        %v988 = vmax.f32 %v940, 0.0
        %v989 = vmax.f32 %v945, 0.0
        %v990 = vmax.f32 %v948, 0.0
        %v991 = vmax.f32 %v953, 0.0
        %v992 = vmax.f32 %v956, 0.0
        %v993 = vmax.f32 %v961, 0.0
        %v994 = vmax.f32 %v964, 0.0
        %v995 = vmax.f32 %v969, 0.0
        %v996 = vmax.f32 %v972, 0.0
        %v997 = vmax.f32 %v977, 0.0
        %v998 = vmax.f32 %v980, 0.0
        %v999 = vld [vmem:[%s7] sm:$0x3]
        %v1000 = vld [vmem:[%s8] sm:$0x3]
        %1002 = vset.pattern.permute.xlu0 0
        %1003 = vperm.xlu0 %1002, %v1000
        %v1004 = vpop.permute.xlu0 %1003
        %1006 = vmatprep.subr.mxu0 0.0
        %1007 = vmatpush1.xpose.msra.mxu0 %v983
        %1008 = vmatprep.subr.mxu0 0.0
        %1009 = vmatpush1.xpose.msra.mxu0 %v984
        %1010 = vmatprep.subr.mxu0 0.0
        %1011 = vmatpush1.xpose.msra.mxu0 %v985
        %1012 = vmatprep.subr.mxu0 0.0
        %1013 = vmatpush1.xpose.msra.mxu0 %v986
        %1014 = vmatprep.subr.mxu0 0.0
        %1015 = vmatpush1.xpose.msra.mxu0 %v987
        %1016 = vmatprep.subr.mxu0 0.0
        %1017 = vmatpush1.xpose.msra.mxu0 %v988
        %1018 = vmatprep.subr.mxu0 0.0
        %1019 = vmatpush1.xpose.msra.mxu0 %v989
        %1020 = vmatprep.subr.mxu0 0.0
        %1021 = vmatpush1.xpose.msra.mxu0 %v990
        %1022 = vmatprep.subr.mxu0 0.0
        %1023 = vmatpush1.xpose.msra.mxu0 %v991
        %1024 = vmatprep.subr.mxu0 0.0
        %1025 = vmatpush1.xpose.msra.mxu0 %v992
        %1026 = vmatprep.subr.mxu0 0.0
        %1027 = vmatpush1.xpose.msra.mxu0 %v993
        %1028 = vmatprep.subr.mxu0 0.0
        %1029 = vmatpush1.xpose.msra.mxu0 %v994
        %1030 = vmatprep.subr.mxu0 0.0
        %1031 = vmatpush1.xpose.msra.mxu0 %v995
        %1032 = vmatprep.subr.mxu0 0.0
        %1033 = vmatpush1.xpose.msra.mxu0 %v996
        %1034 = vmatprep.subr.mxu0 0.0
        %1035 = vmatpush1.xpose.msra.mxu0 %v997
        %1036 = vmatprep.subr.mxu0 0.0
        %1037 = vmatpush1.xpose.msra.mxu0 %v998
        %1038 = vmatprep.subr.mxu0 0.0
        %1039 = vmatpush1.xpose.msra.mxu0 0.0
        %1040 = vmatprep.subr.mxu0 0.0
        %1041 = vmatpush1.xpose.msra.mxu0 0.0
        %1042 = vmatprep.subr.mxu0 0.0
        %1043 = vmatpush1.xpose.msra.mxu0 0.0
        %1044 = vmatprep.subr.mxu0 0.0
        %1045 = vmatpush1.xpose.msra.mxu0 0.0
        %1046 = vmatprep.subr.mxu0 0.0
        %1047 = vmatpush1.xpose.msra.mxu0 0.0
        %1048 = vmatprep.subr.mxu0 0.0
        %1049 = vmatpush1.xpose.msra.mxu0 0.0
        %1050 = vmatprep.subr.mxu0 0.0
        %1051 = vmatpush1.xpose.msra.mxu0 0.0
        %1052 = vmatprep.subr.mxu0 0.0
        %1053 = vmatpush1.xpose.msra.mxu0 0.0
        %1054 = vmatprep.subr.mxu0 0.0
        %1055 = vmatpush1.xpose.msra.mxu0 0.0
        %1056 = vmatprep.subr.mxu0 0.0
        %1057 = vmatpush1.xpose.msra.mxu0 0.0
        %1058 = vmatprep.subr.mxu0 0.0
        %1059 = vmatpush1.xpose.msra.mxu0 0.0
        %1060 = vmatprep.subr.mxu0 0.0
        %1061 = vmatpush1.xpose.msra.mxu0 0.0
        %1062 = vmatprep.subr.mxu0 0.0
        %1063 = vmatpush1.xpose.msra.mxu0 0.0
        %1064 = vmatprep.subr.mxu0 0.0
        %1065 = vmatpush1.xpose.msra.mxu0 0.0
        %1066 = vmatprep.subr.mxu0 0.0
        %1067 = vmatpush1.xpose.msra.mxu0 0.0
        %1068 = vmatprep.subr.mxu0 0.0
        %1069 = vmatpush1.xpose.msra.mxu0 0.0
        %1070 = vmatprep.mubr.f32.mxu0 0.0
        %1071 = vmatmul.mubr.f32.gmra.mrb[0].mxu0 %v999
        %v1072 = vpop.f32.mrb[0].mxu0
        %v1073 = vadd.f32 %v1004, %v1072
        %v1074 = vpop.f32.mrb[0].mxu0
        %1075 = vdwg.mxu0
        %v1076 = vmax.f32 %v1073, 0.0
        %v1077 = vand.u32 2147483647, %v1073
        %v1078 = vsub.f32 0.0, %v1077
        %v1079 = vmul.f32 %v1078, 1.442695
        %v1080 = vpow.pop %v1079
        %v1081 = vadd.f32 %v1080, 1.0
        %v1082 = vlog2.pop %v1081
        %v1083 = vmul.f32 %v1082, 0.6931472
        %v1084 = vadd.f32 %v1076, %v1083
        %v1085 = vmul.f32 %v1084, 0.9
        %v1086 = vadd.f32 %v1085, 0.1
        %v1087 = vlaneseq
        %v1088 = vshrl.u32 %v1087, 7
        %vm1089 = vcmp.eq.s32.totalorder %v1088, 0
        %v1090 = vsel %vm1089, %v1073, %v1086
        %1091 = vst [vmem:[%s371] sm:$0x3] %v1090
        %s1092 = sand.u32 %s230, 1
        %s1093 = scalar_lea.sflag [#allocation3], %s1092
        %s1094 = sand.u32 %s230, 1
        %s1095 = smul.addr %s1094, 2
        %s1096 = scalar_lea.vmem [#allocation2], %s1095
        // Predicated region
        $region57: #{tpu_custom_call.1} parent=55 // pred_check
          %p1097 = pneg %p240
        $region58: #{tpu_custom_call.1} parent=55 // pred_check_branch
          %1099 = sbr.rel (%p1097) target = $region60
        $region59: #{tpu_custom_call.1} parent=55 // pred_region
          %s1101 = ssub.s32 32, 32
          %1102 = vsyncadd %s1093, %s1101
          %s1103 = smul.addr %s23, 32
          %s1104 = scalar_lea.hbm %s9, %s1103
          %s1106 = sshll.u32 %s1096, 4
          %s1107 = int_to_ptr.vmem [resolvable:$true] %s1106
          %1109 = dma.vmem_to_hbm [thread:$0]  %s1107, 32, %s1104, %s1093
        $region60: #{tpu_custom_call.1} parent=55 // pred_fallthru
          _
      $region56: #{tpu_custom_call.1} parent=5 // pred_fallthru
        _
      %p1110 = scmp.le.s32.totalorder 2, %s18
      // Predicated region
      $region61: #{tpu_custom_call.1} parent=5 // pred_check
        %p1111 = pneg %p1110
      $region62: #{tpu_custom_call.1} parent=5 // pred_check_branch
        %1113 = sbr.rel (%p1111) target = $region64
      $region63: #{tpu_custom_call.1} parent=5 // pred_region
        %s1114 = ssub.s32 %s18, 2
        // Predicated region
        $region65: #{tpu_custom_call.1} parent=63 // pred_check
          %p1115 = pneg %p246
        $region66: #{tpu_custom_call.1} parent=63 // pred_check_branch
          %1117 = sbr.rel (%p1115) target = $region68
        $region67: #{tpu_custom_call.1} parent=63 // pred_region
          %s1118 = sand.u32 %s231, 1
          %s1119 = scalar_lea.sflag [#allocation3], %s1118
          %s1120 = sand.u32 %s231, 1
          %s1121 = smul.addr %s1120, 2
          %s1122 = scalar_lea.vmem [#allocation2], %s1121
          %1123 = dma.done %s1119, 32
        $region68: #{tpu_custom_call.1} parent=63 // pred_fallthru
          _
      $region64: #{tpu_custom_call.1} parent=5 // pred_fallthru
        _
    $region6: #{tpu_custom_call.1} parent=1 // loop_footer
      %s22 = sadd.s32 1, %s18
    $region7: #{tpu_custom_call.1} parent=1 // loop_footer_branch
      %17 = sbr.rel target = $region3
    $region8: #{tpu_custom_call.1} parent=1 // loop_exit
      _
    %1124 = vsyncpa [#allocation3], 1
    %s1125 = scalar_lea.sflag [#allocation3], 1
    %1126 = vsyncpa %s1125, 1

</llo_original>
